<compile_context>
chip_gen: v7x
topology: tpu7x:2x2x1
jax: 0.10.0
libtpu: 0.0.40
codegen_flags: <defaults>
</compile_context>

<pallas_src>
import functools
import math

import jax
import jax.numpy as jnp
from jax.experimental import pallas as pl
from jax.experimental.pallas import tpu as pltpu


def _round_up(x, n):
    return -(-x // n) * n


def _vmem_capacity_bytes():
    """Per-core VMEM capacity; conservative (v7x) fallback if the query is unavailable."""
    try:
        info = pltpu.get_tpu_info()
        cap = getattr(info, "vmem_capacity_bytes", None)
        if cap:
            return int(cap)
    except Exception:
        pass
    return 64 * 2 ** 20


def _triaffine_kernel(x1_ref, g_ref, w_ref, o_ref, *, ti, r_b):
    # x1_ref: (n_steps, B_pad, ti) f32 -- resident; dynamic-indexed by the reduction step
    # g_ref : (B_pad, m)               -- outer(x3, x2) flattened, resident
    # w_ref : (m, ti*r_b)              -- streamed weight tile, columns grouped (i, r_b)
    # o_ref : (B_pad, r_b) f32         -- resident output block == accumulator
    s = pl.program_id(1)                       # reduction step over i-tiles

    @pl.when(s == 0)
    def _init():
        o_ref[...] = jnp.zeros_like(o_ref)

    # One MXU matmul per streamed tile: (B_pad, m) @ (m, ti*r_b) -> f32.
    p = jnp.dot(g_ref[...], w_ref[...], preferred_element_type=jnp.float32)

    x1_blk = x1_ref[s]                         # (B_pad, ti), f32 (v5e-safe VPU scaling)
    acc = o_ref[...]
    for t in range(ti):                        # static unroll: scale the RESULT (tiny VPU work)
        acc = acc + x1_blk[:, t:t + 1] * p[:, t * r_b:(t + 1) * r_b]
    o_ref[...] = acc


def triaffine_forward(x1, x2, x3, weight, bias=(True, True, False), *,
                      stream_dtype=jnp.float32, target_tile_bytes=None):
    """Pallas TPU implementation of Triaffine.forward.

    x1: (B, in1), x2: (B, in2), x3: (B, in3)
    weight: (in1 + b0, in3 + b2, in2 + b1, out_features)
    stream_dtype: dtype used for the MXU operands (G and the streamed weight).
                  float32 (default) preserves module numerics; bfloat16 halves the
                  HBM weight stream (~2x for this bandwidth-bound op).
    returns: (B, out_features) float32
    """
    x1 = x1.astype(jnp.float32)
    x2 = x2.astype(jnp.float32)
    x3 = x3.astype(jnp.float32)
    weight = weight.astype(jnp.float32)

    B = x1.shape[0]
    ones = jnp.ones((B, 1), jnp.float32)
    if bias[0]:
        x1 = jnp.concatenate([x1, ones], axis=1)
    if bias[1]:
        x2 = jnp.concatenate([x2, ones], axis=1)
    if bias[2]:
        x3 = jnp.concatenate([x3, ones], axis=1)

    d1, d3, d2, r = weight.shape
    assert x1.shape == (B, d1) and x2.shape == (B, d2) and x3.shape == (B, d3)

    itemsize = jnp.dtype(stream_dtype).itemsize
    b_pad = max(8, _round_up(B, 8))            # sublane-aligned batch
    m = d3 * d2                                # flattened (k, j) reduction (NOT padded)

    # --- megacore: split output columns across a "parallel" grid axis when r allows ---
    n_rb = 2 if (r % 256 == 0) else 1          # each r-block must stay 128-lane aligned
    r_b = r // n_rb

    # --- per-generation VMEM budget & weight-tile sizing --------------------------------
    vmem_cap = _vmem_capacity_bytes()
    vmem_budget = min((vmem_cap * 3) // 4, 100 * 2 ** 20)   # ~48 MiB on v7x, ~96 MiB on v5e/v6e
    if target_tile_bytes is None:
        target_tile_bytes = 8 * 2 ** 20 if vmem_cap <= 64 * 2 ** 20 else 12 * 2 ** 20

    u = 128 // math.gcd(r_b, 128)              # ti granularity so ti*r_b % 128 == 0
    col_bytes = m * r_b * itemsize             # one streamed i-column (per r-block)

    g_vmem = 2 * b_pad * _round_up(m, 128) * 4           # conservative: 2 buffers
    misc_vmem = 2 * 2 ** 20                               # x1 blocks, output, temporaries
    headroom = 4 * 2 ** 20
    # TODO(synk): if even a single u-granule tile (or G) exceeds the budget, a (k,j)
    # reduction-tiling grid axis is needed; we fall back to the minimal tile here.
    avail_w = max(2 * u * col_bytes, vmem_budget - g_vmem - misc_vmem - headroom)
    ti_by_vmem = max(1, avail_w // (2 * _round_up(m, 16) * r_b * itemsize))
    ti_target = int(max(1, min(ti_by_vmem, max(1, target_tile_bytes // col_bytes), 256)))

    if ti_target >= d1:
        ti = d1                                            # single tile: no d1 padding needed
    else:
        n_steps0 = -(-d1 // ti_target)
        ti = int(min(_round_up(-(-d1 // n_steps0), u), _round_up(d1, u)))
    ti = max(1, ti)
    n_steps = -(-d1 // ti)
    d1p = n_steps * ti

    w_tile_vmem = 2 * _round_up(m, 16) * _round_up(ti * r_b, 128) * itemsize
    vmem_limit = int(min(max(w_tile_vmem + g_vmem + misc_vmem + headroom, 24 * 2 ** 20),
                         (vmem_cap * 9) // 10))

    # --- host-side operand preparation (plain JAX glue) ---------------------------------
    x1p = jnp.pad(x1, ((0, b_pad - B), (0, d1p - d1)))     # zero pad -> zero contribution
    x2p = jnp.pad(x2, ((0, b_pad - B), (0, 0)))
    x3p = jnp.pad(x3, ((0, b_pad - B), (0, 0)))

    # G[b, k*d2 + j] = x3[b,k] * x2[b,j]  (matches the weight's (k, j) row-major order)
    g = jnp.einsum('bk,bj->bkj', x3p, x2p).reshape(b_pad, m).astype(stream_dtype)

    # x1 pre-blocked (n_steps, B_pad, ti): fully resident; kernel indexes the first axis.
    x1_blocks = x1p.reshape(b_pad, n_steps, ti).transpose(1, 0, 2)

    # Weight: (d1, d3, d2, r) -> pad d1 -> rows (k,j), columns grouped (r-block, i, r_b).
    wp = jnp.pad(weight, ((0, d1p - d1), (0, 0), (0, 0), (0, 0))).astype(stream_dtype)
    wg = wp.reshape(d1p, m, n_rb, r_b).transpose(2, 1, 0, 3)      # [c, kj, i, rr]
    w3d = wg.reshape(n_rb, m, d1p * r_b)

    weight_bytes = n_rb * m * d1p * r_b * itemsize
    cost = pl.CostEstimate(
        flops=int(2 * b_pad * d1p * m * r),
        transcendentals=0,
        bytes_accessed=int(weight_bytes + b_pad * m * itemsize
                           + n_steps * b_pad * ti * 4 + b_pad * r * 4),
    )

    out = pl.pallas_call(
        functools.partial(_triaffine_kernel, ti=ti, r_b=r_b),
        out_shape=jax.ShapeDtypeStruct((b_pad, r), jnp.float32),
        grid_spec=pltpu.PrefetchScalarGridSpec(
            num_scalar_prefetch=0,
            grid=(n_rb, n_steps),
            in_specs=[
                # x1 blocks: resident across the whole grid (tiny)
                pl.BlockSpec((n_steps, b_pad, ti), lambda c, s: (0, 0, 0)),
                # G: resident across the whole grid
                pl.BlockSpec((b_pad, m), lambda c, s: (0, 0)),
                # streamed weight tile: r-block c, i-tile s (double-buffered by Pallas)
                pl.BlockSpec((None, m, ti * r_b), lambda c, s: (c, 0, s)),
            ],
            # constant index along the reduction axis -> resident f32 accumulator
            out_specs=pl.BlockSpec((b_pad, r_b), lambda c, s: (0, c)),
        ),
        compiler_params=pltpu.CompilerParams(
            dimension_semantics=("parallel", "arbitrary"),
            vmem_limit_bytes=vmem_limit,
        ),
        cost_estimate=cost,
    )(x1_blocks, g, w3d)

    return out[:B]


if __name__ == "__main__":
    # Small shapes consistent with the module's forward.
    B, in1, in2, in3, out_features = 2, 16, 16, 16, 16
    bias = (True, True, False)

    key = jax.random.PRNGKey(0)
    k1, k2, k3, kw = jax.random.split(key, 4)
    x1 = jax.random.normal(k1, (B, in1), jnp.float32)
    x2 = jax.random.normal(k2, (B, in2), jnp.float32)
    x3 = jax.random.normal(k3, (B, in3), jnp.float32)

    # Deterministic parameter init per reset_parameters(): normal, std=0.01.
    wshape = (in1 + int(bias[0]), in3 + int(bias[2]),
              in2 + int(bias[1]), out_features)
    weight = 0.01 * jax.random.normal(kw, wshape, jnp.float32)

    y = jax.block_until_ready(triaffine_forward(x1, x2, x3, weight, bias))

    # Pure-JAX reference of contract('bxi,bzk,ikjr,byj->bxyzr').squeeze()
    ones = jnp.ones((B, 1), jnp.float32)
    x1b = jnp.concatenate([x1, ones], axis=1)
    x2b = jnp.concatenate([x2, ones], axis=1)
    ref = jnp.einsum('bi,bk,ikjr,bj->br', x1b, x3, weight, x2b,
                     precision=jax.lax.Precision.HIGHEST)

    assert y.shape == (B, out_features), y.shape
    # MXU matmul path uses default (reduced) f32 precision -> modest tolerance vs HIGHEST ref.
    assert jnp.allclose(y, ref, rtol=5e-3, atol=5e-3), (y, ref)

    # bf16 streaming path (halves the HBM-bound weight stream); f32 MXU accumulation.
    y_bf16 = jax.block_until_ready(
        triaffine_forward(x1, x2, x3, weight, bias, stream_dtype=jnp.bfloat16))
    assert y_bf16.shape == (B, out_features), y_bf16.shape
    assert jnp.allclose(y_bf16, ref, rtol=5e-2, atol=5e-2), (y_bf16, ref)

    print("KERNEL_OK")
</pallas_src>

<mosaic_0001>
module attributes {stable_mosaic.version = 11 : i64} {
  func.func @_triaffine_kernel(%arg0: i32, %arg1: i32, %arg2: memref<1x8x17xf32, #tpu.memory_space<vmem>>, %arg3: memref<8x272xf32, #tpu.memory_space<vmem>>, %arg4: memref<1x272x272xf32, #tpu.memory_space<vmem>>, %arg5: memref<8x16xf32, #tpu.memory_space<vmem>>) attributes {dimension_semantics = [#tpu.dimension_semantics<parallel>, #tpu.dimension_semantics<arbitrary>], iteration_bounds = array<i64: 1, 1>, scalar_prefetch = 0 : i64, scratch_operands = 0 : i64, tpu.core_type = #tpu.core_type<tc>, window_params = [{pipeline_mode = #tpu.pipeline_mode<synchronous>, transform_indices = @transform_0, window_bounds = array<i64: 1, 8, 17>}, {pipeline_mode = #tpu.pipeline_mode<synchronous>, transform_indices = @transform_1, window_bounds = array<i64: 8, 272>}, {transform_indices = @transform_2, window_bounds = array<i64: 1, 272, 272>}, {transform_indices = @transform_3, window_bounds = array<i64: 8, 16>}]} {
    %c0_i32 = arith.constant 0 : i32
    %0 = arith.cmpi eq, %arg1, %c0_i32 : i32
    %1 = arith.extui %0 : i1 to i32
    %c0_i32_0 = arith.constant 0 : i32
    %2 = arith.cmpi ne, %1, %c0_i32_0 : i32
    scf.if %2 {
      %cst_11 = arith.constant 0.000000e+00 : f32
      %97 = vector.broadcast %cst_11 : f32 to vector<8x16xf32>
      %c0_12 = arith.constant 0 : index
      %c0_13 = arith.constant 0 : index
      %98 = vector.load %arg5[%c0_12, %c0_13] : memref<8x16xf32, #tpu.memory_space<vmem>>, vector<8x16xf32>
      tpu.vector_store %arg5[%c0_12, %c0_13], %97 {strides = array<i32>} : memref<8x16xf32, #tpu.memory_space<vmem>>, vector<8x16xf32>,
    } else {
    }
    %c0 = arith.constant 0 : index
    %c0_1 = arith.constant 0 : index
    %3 = vector.load %arg3[%c0, %c0_1] : memref<8x272xf32, #tpu.memory_space<vmem>>, vector<8x272xf32>
    %c0_2 = arith.constant 0 : index
    %c0_3 = arith.constant 0 : index
    %c0_4 = arith.constant 0 : index
    %4 = vector.load %arg4[%c0_2, %c0_3, %c0_4] : memref<1x272x272xf32, #tpu.memory_space<vmem>>, vector<1x272x272xf32>
    %5 = vector.shape_cast %4 : vector<1x272x272xf32> to vector<272x272xf32>
    %cst = arith.constant dense<0.000000e+00> : vector<8x272xf32>
    %6 = tpu.matmul %3, %5, %cst {dimension_numbers = #tpu.dot_dimension_numbers<[1], [0], [0], [1], [0, 0, 1, 1], [], []>} : vector<8x272xf32>, vector<272x272xf32>, vector<8x272xf32> -> vector<8x272xf32>
    %7 = arith.index_cast %arg1 : i32 to index
    %c0_5 = arith.constant 0 : index
    %c0_6 = arith.constant 0 : index
    %8 = vector.load %arg2[%7, %c0_5, %c0_6] : memref<1x8x17xf32, #tpu.memory_space<vmem>>, vector<1x8x17xf32>
    %9 = vector.shape_cast %8 : vector<1x8x17xf32> to vector<8x17xf32>
    %c0_7 = arith.constant 0 : index
    %c0_8 = arith.constant 0 : index
    %10 = vector.load %arg5[%c0_7, %c0_8] : memref<8x16xf32, #tpu.memory_space<vmem>>, vector<8x16xf32>
    %11 = vector.extract_strided_slice %9 {offsets = [0, 0], sizes = [8, 1], strides = [1, 1]} : vector<8x17xf32> to vector<8x1xf32>
    %12 = vector.extract_strided_slice %6 {offsets = [0, 0], sizes = [8, 16], strides = [1, 1]} : vector<8x272xf32> to vector<8x16xf32>
    %13 = vector.broadcast %11 : vector<8x1xf32> to vector<8x16xf32>
    %14 = arith.mulf %13, %12 : vector<8x16xf32>
    %15 = arith.addf %10, %14 : vector<8x16xf32>
    %16 = vector.extract_strided_slice %9 {offsets = [0, 1], sizes = [8, 1], strides = [1, 1]} : vector<8x17xf32> to vector<8x1xf32>
    %17 = vector.extract_strided_slice %6 {offsets = [0, 16], sizes = [8, 16], strides = [1, 1]} : vector<8x272xf32> to vector<8x16xf32>
    %18 = vector.broadcast %16 : vector<8x1xf32> to vector<8x16xf32>
    %19 = arith.mulf %18, %17 : vector<8x16xf32>
    %20 = arith.addf %15, %19 : vector<8x16xf32>
    %21 = vector.extract_strided_slice %9 {offsets = [0, 2], sizes = [8, 1], strides = [1, 1]} : vector<8x17xf32> to vector<8x1xf32>
    %22 = vector.extract_strided_slice %6 {offsets = [0, 32], sizes = [8, 16], strides = [1, 1]} : vector<8x272xf32> to vector<8x16xf32>
    %23 = vector.broadcast %21 : vector<8x1xf32> to vector<8x16xf32>
    %24 = arith.mulf %23, %22 : vector<8x16xf32>
    %25 = arith.addf %20, %24 : vector<8x16xf32>
    %26 = vector.extract_strided_slice %9 {offsets = [0, 3], sizes = [8, 1], strides = [1, 1]} : vector<8x17xf32> to vector<8x1xf32>
    %27 = vector.extract_strided_slice %6 {offsets = [0, 48], sizes = [8, 16], strides = [1, 1]} : vector<8x272xf32> to vector<8x16xf32>
    %28 = vector.broadcast %26 : vector<8x1xf32> to vector<8x16xf32>
    %29 = arith.mulf %28, %27 : vector<8x16xf32>
    %30 = arith.addf %25, %29 : vector<8x16xf32>
    %31 = vector.extract_strided_slice %9 {offsets = [0, 4], sizes = [8, 1], strides = [1, 1]} : vector<8x17xf32> to vector<8x1xf32>
    %32 = vector.extract_strided_slice %6 {offsets = [0, 64], sizes = [8, 16], strides = [1, 1]} : vector<8x272xf32> to vector<8x16xf32>
    %33 = vector.broadcast %31 : vector<8x1xf32> to vector<8x16xf32>
    %34 = arith.mulf %33, %32 : vector<8x16xf32>
    %35 = arith.addf %30, %34 : vector<8x16xf32>
    %36 = vector.extract_strided_slice %9 {offsets = [0, 5], sizes = [8, 1], strides = [1, 1]} : vector<8x17xf32> to vector<8x1xf32>
    %37 = vector.extract_strided_slice %6 {offsets = [0, 80], sizes = [8, 16], strides = [1, 1]} : vector<8x272xf32> to vector<8x16xf32>
    %38 = vector.broadcast %36 : vector<8x1xf32> to vector<8x16xf32>
    %39 = arith.mulf %38, %37 : vector<8x16xf32>
    %40 = arith.addf %35, %39 : vector<8x16xf32>
    %41 = vector.extract_strided_slice %9 {offsets = [0, 6], sizes = [8, 1], strides = [1, 1]} : vector<8x17xf32> to vector<8x1xf32>
    %42 = vector.extract_strided_slice %6 {offsets = [0, 96], sizes = [8, 16], strides = [1, 1]} : vector<8x272xf32> to vector<8x16xf32>
    %43 = vector.broadcast %41 : vector<8x1xf32> to vector<8x16xf32>
    %44 = arith.mulf %43, %42 : vector<8x16xf32>
    %45 = arith.addf %40, %44 : vector<8x16xf32>
    %46 = vector.extract_strided_slice %9 {offsets = [0, 7], sizes = [8, 1], strides = [1, 1]} : vector<8x17xf32> to vector<8x1xf32>
    %47 = vector.extract_strided_slice %6 {offsets = [0, 112], sizes = [8, 16], strides = [1, 1]} : vector<8x272xf32> to vector<8x16xf32>
    %48 = vector.broadcast %46 : vector<8x1xf32> to vector<8x16xf32>
    %49 = arith.mulf %48, %47 : vector<8x16xf32>
    %50 = arith.addf %45, %49 : vector<8x16xf32>
    %51 = vector.extract_strided_slice %9 {offsets = [0, 8], sizes = [8, 1], strides = [1, 1]} : vector<8x17xf32> to vector<8x1xf32>
    %52 = vector.extract_strided_slice %6 {offsets = [0, 128], sizes = [8, 16], strides = [1, 1]} : vector<8x272xf32> to vector<8x16xf32>
    %53 = vector.broadcast %51 : vector<8x1xf32> to vector<8x16xf32>
    %54 = arith.mulf %53, %52 : vector<8x16xf32>
    %55 = arith.addf %50, %54 : vector<8x16xf32>
    %56 = vector.extract_strided_slice %9 {offsets = [0, 9], sizes = [8, 1], strides = [1, 1]} : vector<8x17xf32> to vector<8x1xf32>
    %57 = vector.extract_strided_slice %6 {offsets = [0, 144], sizes = [8, 16], strides = [1, 1]} : vector<8x272xf32> to vector<8x16xf32>
    %58 = vector.broadcast %56 : vector<8x1xf32> to vector<8x16xf32>
    %59 = arith.mulf %58, %57 : vector<8x16xf32>
    %60 = arith.addf %55, %59 : vector<8x16xf32>
    %61 = vector.extract_strided_slice %9 {offsets = [0, 10], sizes = [8, 1], strides = [1, 1]} : vector<8x17xf32> to vector<8x1xf32>
    %62 = vector.extract_strided_slice %6 {offsets = [0, 160], sizes = [8, 16], strides = [1, 1]} : vector<8x272xf32> to vector<8x16xf32>
    %63 = vector.broadcast %61 : vector<8x1xf32> to vector<8x16xf32>
    %64 = arith.mulf %63, %62 : vector<8x16xf32>
    %65 = arith.addf %60, %64 : vector<8x16xf32>
    %66 = vector.extract_strided_slice %9 {offsets = [0, 11], sizes = [8, 1], strides = [1, 1]} : vector<8x17xf32> to vector<8x1xf32>
    %67 = vector.extract_strided_slice %6 {offsets = [0, 176], sizes = [8, 16], strides = [1, 1]} : vector<8x272xf32> to vector<8x16xf32>
    %68 = vector.broadcast %66 : vector<8x1xf32> to vector<8x16xf32>
    %69 = arith.mulf %68, %67 : vector<8x16xf32>
    %70 = arith.addf %65, %69 : vector<8x16xf32>
    %71 = vector.extract_strided_slice %9 {offsets = [0, 12], sizes = [8, 1], strides = [1, 1]} : vector<8x17xf32> to vector<8x1xf32>
    %72 = vector.extract_strided_slice %6 {offsets = [0, 192], sizes = [8, 16], strides = [1, 1]} : vector<8x272xf32> to vector<8x16xf32>
    %73 = vector.broadcast %71 : vector<8x1xf32> to vector<8x16xf32>
    %74 = arith.mulf %73, %72 : vector<8x16xf32>
    %75 = arith.addf %70, %74 : vector<8x16xf32>
    %76 = vector.extract_strided_slice %9 {offsets = [0, 13], sizes = [8, 1], strides = [1, 1]} : vector<8x17xf32> to vector<8x1xf32>
    %77 = vector.extract_strided_slice %6 {offsets = [0, 208], sizes = [8, 16], strides = [1, 1]} : vector<8x272xf32> to vector<8x16xf32>
    %78 = vector.broadcast %76 : vector<8x1xf32> to vector<8x16xf32>
    %79 = arith.mulf %78, %77 : vector<8x16xf32>
    %80 = arith.addf %75, %79 : vector<8x16xf32>
    %81 = vector.extract_strided_slice %9 {offsets = [0, 14], sizes = [8, 1], strides = [1, 1]} : vector<8x17xf32> to vector<8x1xf32>
    %82 = vector.extract_strided_slice %6 {offsets = [0, 224], sizes = [8, 16], strides = [1, 1]} : vector<8x272xf32> to vector<8x16xf32>
    %83 = vector.broadcast %81 : vector<8x1xf32> to vector<8x16xf32>
    %84 = arith.mulf %83, %82 : vector<8x16xf32>
    %85 = arith.addf %80, %84 : vector<8x16xf32>
    %86 = vector.extract_strided_slice %9 {offsets = [0, 15], sizes = [8, 1], strides = [1, 1]} : vector<8x17xf32> to vector<8x1xf32>
    %87 = vector.extract_strided_slice %6 {offsets = [0, 240], sizes = [8, 16], strides = [1, 1]} : vector<8x272xf32> to vector<8x16xf32>
    %88 = vector.broadcast %86 : vector<8x1xf32> to vector<8x16xf32>
    %89 = arith.mulf %88, %87 : vector<8x16xf32>
    %90 = arith.addf %85, %89 : vector<8x16xf32>
    %91 = vector.extract_strided_slice %9 {offsets = [0, 16], sizes = [8, 1], strides = [1, 1]} : vector<8x17xf32> to vector<8x1xf32>
    %92 = vector.extract_strided_slice %6 {offsets = [0, 256], sizes = [8, 16], strides = [1, 1]} : vector<8x272xf32> to vector<8x16xf32>
    %93 = vector.broadcast %91 : vector<8x1xf32> to vector<8x16xf32>
    %94 = arith.mulf %93, %92 : vector<8x16xf32>
    %95 = arith.addf %90, %94 : vector<8x16xf32>
    %c0_9 = arith.constant 0 : index
    %c0_10 = arith.constant 0 : index
    %96 = vector.load %arg5[%c0_9, %c0_10] : memref<8x16xf32, #tpu.memory_space<vmem>>, vector<8x16xf32>
    tpu.vector_store %arg5[%c0_9, %c0_10], %95 {strides = array<i32>} : memref<8x16xf32, #tpu.memory_space<vmem>>, vector<8x16xf32>,
    return
  }
  func.func @transform_0(%arg0: i32, %arg1: i32) -> (i32, i32, i32) {
    %c0_i32 = arith.constant 0 : i32
    %c0_i32_0 = arith.constant 0 : i32
    %c0_i32_1 = arith.constant 0 : i32
    %c0_i32_2 = arith.constant 0 : i32
    return %c0_i32, %c0_i32_0, %c0_i32_1 : i32, i32, i32
  }
  func.func @transform_1(%arg0: i32, %arg1: i32) -> (i32, i32) {
    %c0_i32 = arith.constant 0 : i32
    %c0_i32_0 = arith.constant 0 : i32
    %c0_i32_1 = arith.constant 0 : i32
    return %c0_i32, %c0_i32_0 : i32, i32
  }
  func.func @transform_2(%arg0: i32, %arg1: i32) -> (i32, i32, i32) {
    %c0_i32 = arith.constant 0 : i32
    %c0_i32_0 = arith.constant 0 : i32
    return %arg0, %c0_i32, %arg1 : i32, i32, i32
  }
  func.func @transform_3(%arg0: i32, %arg1: i32) -> (i32, i32) {
    %c0_i32 = arith.constant 0 : i32
    %c0_i32_0 = arith.constant 0 : i32
    return %c0_i32, %arg0 : i32, i32
  }
}

</mosaic_0001>

<llo_original>
// kernel: tpu_custom_call.1
$region0: #{tpu_custom_call.1}
  #allocation0 [shape = 'u32[]', space=smem, size = 0x4, offset = 0x4, fixed_abs, tag = 'smem constant byte address 0x4 - core index']
  #allocation1 [shape = 'u32[144,128]{1,0:T(1,128)}', space=vmem, size = 0x12000, scoped, tag = 'internal scratch']
  %s0 = inlined_call_operand.hbm [shape: f32[1,8,17], index: 0, kind: input, shape index: {}]
  %s1 = inlined_call_operand.hbm [shape: f32[8,272], index: 1, kind: input, shape index: {}]
  %s2 = inlined_call_operand.hbm [shape: f32[1,272,272], index: 2, kind: input, shape index: {}]
  %s3 = inlined_call_operand.hbm [shape: f32[8,16], index: 3, kind: output, shape index: {}]
  %s4 = sld [smem:[#allocation0]]
  $region38: #{tpu_custom_call.1} parent=0
    _
  %s6 = ssub.s32 1, %s4
  %s7 = scalar_select 0, %s6, %s4
  $region1: #{tpu_custom_call.1} parent=0
    #allocation2 [shape = 'u8[4096]{0}', space=vmem, size = 0x1000, scoped, tag = 'input window, operand 0, single buffered']
    #allocation3 [shape = 's32[1]{0}', space=sflag, size = 0x4, scoped, tag = 'scoped memory for tpu_custom_call.1']
    #allocation4 [shape = 's32[1]{0}', space=sflag, size = 0x4, scoped, tag = 'scoped memory for tpu_custom_call.1']
    #allocation5 [shape = 'u8[12288]{0}', space=vmem, size = 0x3000, scoped, tag = 'input window, operand 1, single buffered']
    #allocation6 [shape = 's32[1]{0}', space=sflag, size = 0x4, scoped, tag = 'scoped memory for tpu_custom_call.1']
    #allocation7 [shape = 'u8[417792]{0}', space=vmem, size = 0x66000, scoped, tag = 'input window, operand 2, single buffered']
    #allocation8 [shape = 'u8[4096]{0}', space=vmem, size = 0x1000, scoped, tag = 'output window, operand 0, single buffered']
    %8 = vsyncpa [#allocation3], 0
    %9 = vsyncpa [#allocation6], 0
    %10 = vsyncpa [#allocation4], 0
    // Predicated region
    $region2: #{tpu_custom_call.1} parent=1 // pred_check
      _
    $region3: #{tpu_custom_call.1} parent=1 // pred_check_branch
      %12 = sbr.rel (0) target = $region5
    $region4: #{tpu_custom_call.1} parent=1 // pred_region
      %s14 = ssub.s32 128, 128
      %15 = vsyncadd [#allocation3], %s14
      %s17 = sshll.u32 [#allocation2], 4
      %s18 = int_to_ptr.vmem [resolvable:$true] %s17
      %20 = dma.hbm_to_vmem [thread:$0]  %s0, 128, %s18, [#allocation3]
    $region5: #{tpu_custom_call.1} parent=1 // pred_fallthru
      _
    // Predicated region
    $region6: #{tpu_custom_call.1} parent=1 // pred_check
      _
    $region7: #{tpu_custom_call.1} parent=1 // pred_check_branch
      %22 = sbr.rel (0) target = $region9
    $region8: #{tpu_custom_call.1} parent=1 // pred_region
      %s24 = ssub.s32 384, 384
      %25 = vsyncadd [#allocation6], %s24
      %s27 = sshll.u32 [#allocation5], 4
      %s28 = int_to_ptr.vmem [resolvable:$true] %s27
      %30 = dma.hbm_to_vmem [thread:$0]  %s1, 384, %s28, [#allocation6]
    $region9: #{tpu_custom_call.1} parent=1 // pred_fallthru
      _
    // Predicated region
    $region10: #{tpu_custom_call.1} parent=1 // pred_check
      _
    $region11: #{tpu_custom_call.1} parent=1 // pred_check_branch
      %32 = sbr.rel (0) target = $region13
    $region12: #{tpu_custom_call.1} parent=1 // pred_region
      %s34 = ssub.s32 13056, 13056
      %35 = vsyncadd [#allocation6], %s34
      %s36 = sshll.u32 [#allocation7], 4
      %s37 = int_to_ptr.vmem [resolvable:$true] %s36
      %42 = dma.hbm_to_vmem [thread:$0]  %s2, 13056, %s37, [#allocation6], 384, 384, 24
    $region13: #{tpu_custom_call.1} parent=1 // pred_fallthru
      _
    // Predicated region
    $region14: #{tpu_custom_call.1} parent=1 // pred_check
      _
    $region15: #{tpu_custom_call.1} parent=1 // pred_check_branch
      %44 = sbr.rel (0) target = $region17
    $region16: #{tpu_custom_call.1} parent=1 // pred_region
      %45 = dma.done [#allocation3], 128
    $region17: #{tpu_custom_call.1} parent=1 // pred_fallthru
      _
    // Predicated region
    $region18: #{tpu_custom_call.1} parent=1 // pred_check
      _
    $region19: #{tpu_custom_call.1} parent=1 // pred_check_branch
      %47 = sbr.rel (0) target = $region21
    $region20: #{tpu_custom_call.1} parent=1 // pred_region
      %48 = dma.done [#allocation6], 384
    $region21: #{tpu_custom_call.1} parent=1 // pred_fallthru
      _
    // Predicated region
    $region22: #{tpu_custom_call.1} parent=1 // pred_check
      _
    $region23: #{tpu_custom_call.1} parent=1 // pred_check_branch
      %50 = sbr.rel (0) target = $region25
    $region24: #{tpu_custom_call.1} parent=1 // pred_region
      %51 = dma.done [#allocation6], 13056
    $region25: #{tpu_custom_call.1} parent=1 // pred_fallthru
      _
    %p52 = scmp.eq.s32.totalorder 0, 0
    // Predicated region
    $region26: #{tpu_custom_call.1} parent=1 // pred_check
      %p53 = pneg %p52
    $region27: #{tpu_custom_call.1} parent=1 // pred_check_branch
      %55 = sbr.rel (%p53) target = $region29
    $region28: #{tpu_custom_call.1} parent=1 // pred_region
      %vm56 = vcmask 130048
      %57 = vst.msk [vmem:[#allocation8] sm:$0xff] %vm56, 0.0
    $region29: #{tpu_custom_call.1} parent=1 // pred_fallthru
      _
    %v58 = vld [vmem:[#allocation5] sm:$0xff]
    %v59 = vld [vmem:[#allocation5 + $0x8] sm:$0xff]
    %v60 = vld [vmem:[#allocation5 + $0x10] sm:$0xff]
    %v61 = vld [vmem:[#allocation7] sm:$0xff]
    %v62 = vld [vmem:[#allocation7 + $0x8] sm:$0xff]
    %v63 = vld [vmem:[#allocation7 + $0x10] sm:$0xff]
    %v64 = vld [vmem:[#allocation7 + $0x18] sm:$0xff]
    %v65 = vld [vmem:[#allocation7 + $0x20] sm:$0xff]
    %v66 = vld [vmem:[#allocation7 + $0x28] sm:$0xff]
    %v67 = vld [vmem:[#allocation7 + $0x30] sm:$0xff]
    %v68 = vld [vmem:[#allocation7 + $0x38] sm:$0xff]
    %v69 = vld [vmem:[#allocation7 + $0x40] sm:$0xff]
    %v70 = vld [vmem:[#allocation7 + $0x48] sm:$0xff]
    %v71 = vld [vmem:[#allocation7 + $0x50] sm:$0xff]
    %v72 = vld [vmem:[#allocation7 + $0x58] sm:$0xff]
    %v73 = vld [vmem:[#allocation7 + $0x60] sm:$0xff]
    %v74 = vld [vmem:[#allocation7 + $0x68] sm:$0xff]
    %v75 = vld [vmem:[#allocation7 + $0x70] sm:$0xff]
    %v76 = vld [vmem:[#allocation7 + $0x78] sm:$0xff]
    %v77 = vld [vmem:[#allocation7 + $0x80] sm:$0xff]
    %v78 = vld [vmem:[#allocation7 + $0x88] sm:$0xff]
    %v79 = vld [vmem:[#allocation7 + $0x90] sm:$0xff]
    %v80 = vld [vmem:[#allocation7 + $0x98] sm:$0xff]
    %v81 = vld [vmem:[#allocation7 + $0xa0] sm:$0xff]
    %v82 = vld [vmem:[#allocation7 + $0xa8] sm:$0xff]
    %v83 = vld [vmem:[#allocation7 + $0xb0] sm:$0xff]
    %v84 = vld [vmem:[#allocation7 + $0xb8] sm:$0xff]
    %v85 = vld [vmem:[#allocation7 + $0xc0] sm:$0xff]
    %v86 = vld [vmem:[#allocation7 + $0xc8] sm:$0xff]
    %v87 = vld [vmem:[#allocation7 + $0xd0] sm:$0xff]
    %v88 = vld [vmem:[#allocation7 + $0xd8] sm:$0xff]
    %v89 = vld [vmem:[#allocation7 + $0xe0] sm:$0xff]
    %v90 = vld [vmem:[#allocation7 + $0xe8] sm:$0xff]
    %v91 = vld [vmem:[#allocation7 + $0xf0] sm:$0xff]
    %v92 = vld [vmem:[#allocation7 + $0xf8] sm:$0xff]
    %v93 = vld [vmem:[#allocation7 + $0x100] sm:$0xff]
    %v94 = vld [vmem:[#allocation7 + $0x108] sm:$0xff]
    %v95 = vld [vmem:[#allocation7 + $0x110] sm:$0xff]
    %v96 = vld [vmem:[#allocation7 + $0x118] sm:$0xff]
    %v97 = vld [vmem:[#allocation7 + $0x120] sm:$0xff]
    %v98 = vld [vmem:[#allocation7 + $0x128] sm:$0xff]
    %v99 = vld [vmem:[#allocation7 + $0x130] sm:$0xff]
    %v100 = vld [vmem:[#allocation7 + $0x138] sm:$0xff]
    %v101 = vld [vmem:[#allocation7 + $0x140] sm:$0xff]
    %v102 = vld [vmem:[#allocation7 + $0x148] sm:$0xff]
    %v103 = vld [vmem:[#allocation7 + $0x150] sm:$0xff]
    %v104 = vld [vmem:[#allocation7 + $0x158] sm:$0xff]
    %v105 = vld [vmem:[#allocation7 + $0x160] sm:$0xff]
    %v106 = vld [vmem:[#allocation7 + $0x168] sm:$0xff]
    %v107 = vld [vmem:[#allocation7 + $0x170] sm:$0xff]
    %v108 = vld [vmem:[#allocation7 + $0x178] sm:$0xff]
    %v109 = vld [vmem:[#allocation7 + $0x180] sm:$0xff]
    %v110 = vld [vmem:[#allocation7 + $0x188] sm:$0xff]
    %v111 = vld [vmem:[#allocation7 + $0x190] sm:$0xff]
    %v112 = vld [vmem:[#allocation7 + $0x198] sm:$0xff]
    %v113 = vld [vmem:[#allocation7 + $0x1a0] sm:$0xff]
    %v114 = vld [vmem:[#allocation7 + $0x1a8] sm:$0xff]
    %v115 = vld [vmem:[#allocation7 + $0x1b0] sm:$0xff]
    %v116 = vld [vmem:[#allocation7 + $0x1b8] sm:$0xff]
    %v117 = vld [vmem:[#allocation7 + $0x1c0] sm:$0xff]
    %v118 = vld [vmem:[#allocation7 + $0x1c8] sm:$0xff]
    %v119 = vld [vmem:[#allocation7 + $0x1d0] sm:$0xff]
    %v120 = vld [vmem:[#allocation7 + $0x1d8] sm:$0xff]
    %v121 = vld [vmem:[#allocation7 + $0x1e0] sm:$0xff]
    %v122 = vld [vmem:[#allocation7 + $0x1e8] sm:$0xff]
    %v123 = vld [vmem:[#allocation7 + $0x1f0] sm:$0xff]
    %v124 = vld [vmem:[#allocation7 + $0x1f8] sm:$0xff]
    %v125 = vld [vmem:[#allocation7 + $0x200] sm:$0xff]
    %v126 = vld [vmem:[#allocation7 + $0x208] sm:$0xff]
    %v127 = vld [vmem:[#allocation7 + $0x210] sm:$0xff]
    %v128 = vld [vmem:[#allocation7 + $0x218] sm:$0xff]
    %v129 = vld [vmem:[#allocation7 + $0x220] sm:$0xff]
    %v130 = vld [vmem:[#allocation7 + $0x228] sm:$0xff]
    %v131 = vld [vmem:[#allocation7 + $0x230] sm:$0xff]
    %v132 = vld [vmem:[#allocation7 + $0x238] sm:$0xff]
    %v133 = vld [vmem:[#allocation7 + $0x240] sm:$0xff]
    %v134 = vld [vmem:[#allocation7 + $0x248] sm:$0xff]
    %v135 = vld [vmem:[#allocation7 + $0x250] sm:$0xff]
    %v136 = vld [vmem:[#allocation7 + $0x258] sm:$0xff]
    %v137 = vld [vmem:[#allocation7 + $0x260] sm:$0xff]
    %v138 = vld [vmem:[#allocation7 + $0x268] sm:$0xff]
    %v139 = vld [vmem:[#allocation7 + $0x270] sm:$0xff]
    %v140 = vld [vmem:[#allocation7 + $0x278] sm:$0xff]
    %v141 = vld [vmem:[#allocation7 + $0x280] sm:$0xff]
    %v142 = vld [vmem:[#allocation7 + $0x288] sm:$0xff]
    %v143 = vld [vmem:[#allocation7 + $0x290] sm:$0xff]
    %v144 = vld [vmem:[#allocation7 + $0x298] sm:$0xff]
    %v145 = vld [vmem:[#allocation7 + $0x2a0] sm:$0xff]
    %v146 = vld [vmem:[#allocation7 + $0x2a8] sm:$0xff]
    %v147 = vld [vmem:[#allocation7 + $0x2b0] sm:$0xff]
    %v148 = vld [vmem:[#allocation7 + $0x2b8] sm:$0xff]
    %v149 = vld [vmem:[#allocation7 + $0x2c0] sm:$0xff]
    %v150 = vld [vmem:[#allocation7 + $0x2c8] sm:$0xff]
    %v151 = vld [vmem:[#allocation7 + $0x2d0] sm:$0xff]
    %v152 = vld [vmem:[#allocation7 + $0x2d8] sm:$0xff]
    %v153 = vld [vmem:[#allocation7 + $0x2e0] sm:$0xff]
    %v154 = vld [vmem:[#allocation7 + $0x2e8] sm:$0xff]
    %v155 = vld [vmem:[#allocation7 + $0x2f0] sm:$0xff]
    %v156 = vld [vmem:[#allocation7 + $0x2f8] sm:$0xff]
    %v157 = vld [vmem:[#allocation7 + $0x300] sm:$0xff]
    %v158 = vld [vmem:[#allocation7 + $0x308] sm:$0xff]
    %v159 = vld [vmem:[#allocation7 + $0x310] sm:$0xff]
    %v160 = vld [vmem:[#allocation7 + $0x318] sm:$0xff]
    %v161 = vld [vmem:[#allocation7 + $0x320] sm:$0xff]
    %v162 = vld [vmem:[#allocation7 + $0x328] sm:$0xff]
    %vm163 = vcmask 130048
    %v165 = vsel %vm163, %v60, 0
    %167 = vmatprep.subr.mxu0 %v62
    %168 = vmatpush1.msra.mxu0 %v61
    %169 = vmatprep.subr.mxu0 %v65
    %170 = vmatpush1.msra.mxu0 %v64
    %171 = vmatprep.subr.mxu0 %v68
    %172 = vmatpush1.msra.mxu0 %v67
    %173 = vmatprep.subr.mxu0 %v71
    %174 = vmatpush1.msra.mxu0 %v70
    %175 = vmatprep.subr.mxu0 %v74
    %176 = vmatpush1.msra.mxu0 %v73
    %177 = vmatprep.subr.mxu0 %v77
    %178 = vmatpush1.msra.mxu0 %v76
    %179 = vmatprep.subr.mxu0 %v80
    %180 = vmatpush1.msra.mxu0 %v79
    %181 = vmatprep.subr.mxu0 %v83
    %182 = vmatpush1.msra.mxu0 %v82
    %183 = vmatprep.subr.mxu0 %v86
    %184 = vmatpush1.msra.mxu0 %v85
    %185 = vmatprep.subr.mxu0 %v89
    %186 = vmatpush1.msra.mxu0 %v88
    %187 = vmatprep.subr.mxu0 %v92
    %188 = vmatpush1.msra.mxu0 %v91
    %189 = vmatprep.subr.mxu0 %v95
    %190 = vmatpush1.msra.mxu0 %v94
    %191 = vmatprep.subr.mxu0 %v98
    %192 = vmatpush1.msra.mxu0 %v97
    %193 = vmatprep.subr.mxu0 %v101
    %194 = vmatpush1.msra.mxu0 %v100
    %195 = vmatprep.subr.mxu0 %v104
    %196 = vmatpush1.msra.mxu0 %v103
    %197 = vmatprep.subr.mxu0 %v107
    %198 = vmatpush1.msra.mxu0 %v106
    %199 = vmatprep.subr.mxu0 %v110
    %200 = vmatpush1.msra.mxu0 %v109
    %201 = vmatprep.subr.mxu0 %v113
    %202 = vmatpush1.msra.mxu0 %v112
    %203 = vmatprep.subr.mxu0 %v116
    %204 = vmatpush1.msra.mxu0 %v115
    %205 = vmatprep.subr.mxu0 %v119
    %206 = vmatpush1.msra.mxu0 %v118
    %207 = vmatprep.subr.mxu0 %v122
    %208 = vmatpush1.msra.mxu0 %v121
    %209 = vmatprep.subr.mxu0 %v125
    %210 = vmatpush1.msra.mxu0 %v124
    %211 = vmatprep.subr.mxu0 %v128
    %212 = vmatpush1.msra.mxu0 %v127
    %213 = vmatprep.subr.mxu0 %v131
    %214 = vmatpush1.msra.mxu0 %v130
    %215 = vmatprep.subr.mxu0 %v134
    %216 = vmatpush1.msra.mxu0 %v133
    %217 = vmatprep.subr.mxu0 %v137
    %218 = vmatpush1.msra.mxu0 %v136
    %219 = vmatprep.subr.mxu0 %v140
    %220 = vmatpush1.msra.mxu0 %v139
    %221 = vmatprep.subr.mxu0 %v143
    %222 = vmatpush1.msra.mxu0 %v142
    %223 = vmatprep.subr.mxu0 %v146
    %224 = vmatpush1.msra.mxu0 %v145
    %225 = vmatprep.subr.mxu0 %v149
    %226 = vmatpush1.msra.mxu0 %v148
    %227 = vmatprep.subr.mxu0 %v152
    %228 = vmatpush1.msra.mxu0 %v151
    %229 = vmatprep.subr.mxu0 %v155
    %230 = vmatpush1.msra.mxu0 %v154
    %231 = vmatprep.mubr.f32.mxu0 %v59
    %232 = vmatmul.mubr.f32.gmra.mrb[0].mxu0 %v58
    %v233 = vpop.f32.mrb[0].mxu0
    %v234 = vadd.f32 0.0, %v233
    %v235 = vpop.f32.mrb[0].mxu0
    %v236 = vadd.f32 0.0, %v235
    %237 = vdwg.mxu0
    %238 = vmatprep.subr.mxu0 %v158
    %239 = vmatpush1.msra.mxu0 %v157
    %240 = vmatprep.subr.mxu0 %v161
    %241 = vmatpush1.msra.mxu0 %v160
    %242 = vmatprep.subr.mxu0 0.0
    %243 = vmatpush1.msra.mxu0 0.0
    %244 = vmatprep.subr.mxu0 0.0
    %245 = vmatpush1.msra.mxu0 0.0
    %246 = vmatprep.subr.mxu0 0.0
    %247 = vmatpush1.msra.mxu0 0.0
    %248 = vmatprep.subr.mxu0 0.0
    %249 = vmatpush1.msra.mxu0 0.0
    %250 = vmatprep.subr.mxu0 0.0
    %251 = vmatpush1.msra.mxu0 0.0
    %252 = vmatprep.subr.mxu0 0.0
    %253 = vmatpush1.msra.mxu0 0.0
    %254 = vmatprep.subr.mxu0 0.0
    %255 = vmatpush1.msra.mxu0 0.0
    %256 = vmatprep.subr.mxu0 0.0
    %257 = vmatpush1.msra.mxu0 0.0
    %258 = vmatprep.subr.mxu0 0.0
    %259 = vmatpush1.msra.mxu0 0.0
    %260 = vmatprep.subr.mxu0 0.0
    %261 = vmatpush1.msra.mxu0 0.0
    %262 = vmatprep.subr.mxu0 0.0
    %263 = vmatpush1.msra.mxu0 0.0
    %264 = vmatprep.subr.mxu0 0.0
    %265 = vmatpush1.msra.mxu0 0.0
    %266 = vmatprep.subr.mxu0 0.0
    %267 = vmatpush1.msra.mxu0 0.0
    %268 = vmatprep.subr.mxu0 0.0
    %269 = vmatpush1.msra.mxu0 0.0
    %270 = vmatprep.subr.mxu0 0.0
    %271 = vmatpush1.msra.mxu0 0.0
    %272 = vmatprep.subr.mxu0 0.0
    %273 = vmatpush1.msra.mxu0 0.0
    %274 = vmatprep.subr.mxu0 0.0
    %275 = vmatpush1.msra.mxu0 0.0
    %276 = vmatprep.subr.mxu0 0.0
    %277 = vmatpush1.msra.mxu0 0.0
    %278 = vmatprep.subr.mxu0 0.0
    %279 = vmatpush1.msra.mxu0 0.0
    %280 = vmatprep.subr.mxu0 0.0
    %281 = vmatpush1.msra.mxu0 0.0
    %282 = vmatprep.subr.mxu0 0.0
    %283 = vmatpush1.msra.mxu0 0.0
    %284 = vmatprep.subr.mxu0 0.0
    %285 = vmatpush1.msra.mxu0 0.0
    %286 = vmatprep.subr.mxu0 0.0
    %287 = vmatpush1.msra.mxu0 0.0
    %288 = vmatprep.subr.mxu0 0.0
    %289 = vmatpush1.msra.mxu0 0.0
    %290 = vmatprep.subr.mxu0 0.0
    %291 = vmatpush1.msra.mxu0 0.0
    %292 = vmatprep.subr.mxu0 0.0
    %293 = vmatpush1.msra.mxu0 0.0
    %294 = vmatprep.subr.mxu0 0.0
    %295 = vmatpush1.msra.mxu0 0.0
    %296 = vmatprep.subr.mxu0 0.0
    %297 = vmatpush1.msra.mxu0 0.0
    %298 = vmatprep.subr.mxu0 0.0
    %299 = vmatpush1.msra.mxu0 0.0
    %300 = vmatprep.subr.mxu0 0.0
    %301 = vmatpush1.msra.mxu0 0.0
    %302 = vmatprep.mubr.f32.mxu0 0.0
    %303 = vmatmul.mubr.f32.gmra.mrb[0].mxu0 %v165
    %v304 = vpop.f32.mrb[0].mxu0
    %v305 = vadd.f32 %v234, %v304
    %v306 = vpop.f32.mrb[0].mxu0
    %v307 = vadd.f32 %v236, %v306
    %308 = vdwg.mxu0
    %309 = vmatprep.subr.mxu0 0.0
    %310 = vmatpush1.msra.mxu0 %v63
    %311 = vmatprep.subr.mxu0 0.0
    %312 = vmatpush1.msra.mxu0 %v66
    %313 = vmatprep.subr.mxu0 0.0
    %314 = vmatpush1.msra.mxu0 %v69
    %315 = vmatprep.subr.mxu0 0.0
    %316 = vmatpush1.msra.mxu0 %v72
    %317 = vmatprep.subr.mxu0 0.0
    %318 = vmatpush1.msra.mxu0 %v75
    %319 = vmatprep.subr.mxu0 0.0
    %320 = vmatpush1.msra.mxu0 %v78
    %321 = vmatprep.subr.mxu0 0.0
    %322 = vmatpush1.msra.mxu0 %v81
    %323 = vmatprep.subr.mxu0 0.0
    %324 = vmatpush1.msra.mxu0 %v84
    %325 = vmatprep.subr.mxu0 0.0
    %326 = vmatpush1.msra.mxu0 %v87
    %327 = vmatprep.subr.mxu0 0.0
    %328 = vmatpush1.msra.mxu0 %v90
    %329 = vmatprep.subr.mxu0 0.0
    %330 = vmatpush1.msra.mxu0 %v93
    %331 = vmatprep.subr.mxu0 0.0
    %332 = vmatpush1.msra.mxu0 %v96
    %333 = vmatprep.subr.mxu0 0.0
    %334 = vmatpush1.msra.mxu0 %v99
    %335 = vmatprep.subr.mxu0 0.0
    %336 = vmatpush1.msra.mxu0 %v102
    %337 = vmatprep.subr.mxu0 0.0
    %338 = vmatpush1.msra.mxu0 %v105
    %339 = vmatprep.subr.mxu0 0.0
    %340 = vmatpush1.msra.mxu0 %v108
    %341 = vmatprep.subr.mxu0 0.0
    %342 = vmatpush1.msra.mxu0 %v111
    %343 = vmatprep.subr.mxu0 0.0
    %344 = vmatpush1.msra.mxu0 %v114
    %345 = vmatprep.subr.mxu0 0.0
    %346 = vmatpush1.msra.mxu0 %v117
    %347 = vmatprep.subr.mxu0 0.0
    %348 = vmatpush1.msra.mxu0 %v120
    %349 = vmatprep.subr.mxu0 0.0
    %350 = vmatpush1.msra.mxu0 %v123
    %351 = vmatprep.subr.mxu0 0.0
    %352 = vmatpush1.msra.mxu0 %v126
    %353 = vmatprep.subr.mxu0 0.0
    %354 = vmatpush1.msra.mxu0 %v129
    %355 = vmatprep.subr.mxu0 0.0
    %356 = vmatpush1.msra.mxu0 %v132
    %357 = vmatprep.subr.mxu0 0.0
    %358 = vmatpush1.msra.mxu0 %v135
    %359 = vmatprep.subr.mxu0 0.0
    %360 = vmatpush1.msra.mxu0 %v138
    %361 = vmatprep.subr.mxu0 0.0
    %362 = vmatpush1.msra.mxu0 %v141
    %363 = vmatprep.subr.mxu0 0.0
    %364 = vmatpush1.msra.mxu0 %v144
    %365 = vmatprep.subr.mxu0 0.0
    %366 = vmatpush1.msra.mxu0 %v147
    %367 = vmatprep.subr.mxu0 0.0
    %368 = vmatpush1.msra.mxu0 %v150
    %369 = vmatprep.subr.mxu0 0.0
    %370 = vmatpush1.msra.mxu0 %v153
    %371 = vmatprep.subr.mxu0 0.0
    %372 = vmatpush1.msra.mxu0 %v156
    %373 = vmatprep.mubr.f32.mxu0 %v59
    %374 = vmatmul.mubr.f32.gmra.mrb[0].mxu0 %v58
    %v375 = vpop.f32.mrb[0].mxu0
    %v376 = vadd.f32 0.0, %v375
    %v377 = vpop.f32.mrb[0].mxu0
    %378 = vdwg.mxu0
    %379 = vmatprep.subr.mxu0 0.0
    %380 = vmatpush1.msra.mxu0 %v159
    %381 = vmatprep.subr.mxu0 0.0
    %382 = vmatpush1.msra.mxu0 %v162
    %383 = vmatprep.subr.mxu0 0.0
    %384 = vmatpush1.msra.mxu0 0.0
    %385 = vmatprep.subr.mxu0 0.0
    %386 = vmatpush1.msra.mxu0 0.0
    %387 = vmatprep.subr.mxu0 0.0
    %388 = vmatpush1.msra.mxu0 0.0
    %389 = vmatprep.subr.mxu0 0.0
    %390 = vmatpush1.msra.mxu0 0.0
    %391 = vmatprep.subr.mxu0 0.0
    %392 = vmatpush1.msra.mxu0 0.0
    %393 = vmatprep.subr.mxu0 0.0
    %394 = vmatpush1.msra.mxu0 0.0
    %395 = vmatprep.subr.mxu0 0.0
    %396 = vmatpush1.msra.mxu0 0.0
    %397 = vmatprep.subr.mxu0 0.0
    %398 = vmatpush1.msra.mxu0 0.0
    %399 = vmatprep.subr.mxu0 0.0
    %400 = vmatpush1.msra.mxu0 0.0
    %401 = vmatprep.subr.mxu0 0.0
    %402 = vmatpush1.msra.mxu0 0.0
    %403 = vmatprep.subr.mxu0 0.0
    %404 = vmatpush1.msra.mxu0 0.0
    %405 = vmatprep.subr.mxu0 0.0
    %406 = vmatpush1.msra.mxu0 0.0
    %407 = vmatprep.subr.mxu0 0.0
    %408 = vmatpush1.msra.mxu0 0.0
    %409 = vmatprep.subr.mxu0 0.0
    %410 = vmatpush1.msra.mxu0 0.0
    %411 = vmatprep.subr.mxu0 0.0
    %412 = vmatpush1.msra.mxu0 0.0
    %413 = vmatprep.subr.mxu0 0.0
    %414 = vmatpush1.msra.mxu0 0.0
    %415 = vmatprep.subr.mxu0 0.0
    %416 = vmatpush1.msra.mxu0 0.0
    %417 = vmatprep.subr.mxu0 0.0
    %418 = vmatpush1.msra.mxu0 0.0
    %419 = vmatprep.subr.mxu0 0.0
    %420 = vmatpush1.msra.mxu0 0.0
    %421 = vmatprep.subr.mxu0 0.0
    %422 = vmatpush1.msra.mxu0 0.0
    %423 = vmatprep.subr.mxu0 0.0
    %424 = vmatpush1.msra.mxu0 0.0
    %425 = vmatprep.subr.mxu0 0.0
    %426 = vmatpush1.msra.mxu0 0.0
    %427 = vmatprep.subr.mxu0 0.0
    %428 = vmatpush1.msra.mxu0 0.0
    %429 = vmatprep.subr.mxu0 0.0
    %430 = vmatpush1.msra.mxu0 0.0
    %431 = vmatprep.subr.mxu0 0.0
    %432 = vmatpush1.msra.mxu0 0.0
    %433 = vmatprep.subr.mxu0 0.0
    %434 = vmatpush1.msra.mxu0 0.0
    %435 = vmatprep.subr.mxu0 0.0
    %436 = vmatpush1.msra.mxu0 0.0
    %437 = vmatprep.subr.mxu0 0.0
    %438 = vmatpush1.msra.mxu0 0.0
    %439 = vmatprep.subr.mxu0 0.0
    %440 = vmatpush1.msra.mxu0 0.0
    %441 = vmatprep.subr.mxu0 0.0
    %442 = vmatpush1.msra.mxu0 0.0
    %443 = vmatprep.mubr.f32.mxu0 0.0
    %444 = vmatmul.mubr.f32.gmra.mrb[0].mxu0 %v165
    %v445 = vpop.f32.mrb[0].mxu0
    %v446 = vadd.f32 %v376, %v445
    %v447 = vpop.f32.mrb[0].mxu0
    %448 = vdwg.mxu0
    %s449 = smul.u32 0, 8
    %s450 = scalar_lea.vmem [#allocation2], %s449
    %v451 = vld [vmem:[%s450] sm:$0xff]
    %v452 = vld [vmem:[#allocation8] sm:$0xff]
    %454 = vset.pattern.permute.xlu0 0
    %455 = vperm.xlu0 %454, %v451
    %v456 = vpop.permute.xlu0 %455
    %v458 = vmul.f32 %v456, %v305
    %v459 = vadd.f32 %v452, %v458
    %460 = vset.pattern.permute.xlu0 1
    %461 = vperm.xlu0 %460, %v451
    %v462 = vpop.permute.xlu0 %461
    %v464 = vmul.f32 %v462, %v305
    %466 = vrot.lane.b32.xlu0 %v464, 112
    %v467 = vpop.permute.xlu0 %466
    %v469 = vadd.f32 %v459, %v467
    %470 = vset.pattern.permute.xlu0 2
    %471 = vperm.xlu0 %470, %v451
    %v472 = vpop.permute.xlu0 %471
    %v474 = vmul.f32 %v472, %v305
    %476 = vrot.lane.b32.xlu0 %v474, 96
    %v477 = vpop.permute.xlu0 %476
    %v479 = vadd.f32 %v469, %v477
    %480 = vset.pattern.permute.xlu0 3
    %481 = vperm.xlu0 %480, %v451
    %v482 = vpop.permute.xlu0 %481
    %v484 = vmul.f32 %v482, %v305
    %486 = vrot.lane.b32.xlu0 %v484, 80
    %v487 = vpop.permute.xlu0 %486
    %v489 = vadd.f32 %v479, %v487
    %490 = vset.pattern.permute.xlu0 4
    %491 = vperm.xlu0 %490, %v451
    %v492 = vpop.permute.xlu0 %491
    %v494 = vmul.f32 %v492, %v305
    %496 = vrot.lane.b32.xlu0 %v494, 64
    %v497 = vpop.permute.xlu0 %496
    %v499 = vadd.f32 %v489, %v497
    %500 = vset.pattern.permute.xlu0 5
    %501 = vperm.xlu0 %500, %v451
    %v502 = vpop.permute.xlu0 %501
    %v504 = vmul.f32 %v502, %v305
    %506 = vrot.lane.b32.xlu0 %v504, 48
    %v507 = vpop.permute.xlu0 %506
    %v509 = vadd.f32 %v499, %v507
    %510 = vset.pattern.permute.xlu0 6
    %511 = vperm.xlu0 %510, %v451
    %v512 = vpop.permute.xlu0 %511
    %v514 = vmul.f32 %v512, %v305
    %516 = vrot.lane.b32.xlu0 %v514, 32
    %v517 = vpop.permute.xlu0 %516
    %v519 = vadd.f32 %v509, %v517
    %520 = vset.pattern.permute.xlu0 7
    %521 = vperm.xlu0 %520, %v451
    %v522 = vpop.permute.xlu0 %521
    %v524 = vmul.f32 %v522, %v305
    %526 = vrot.lane.b32.xlu0 %v524, 16
    %v527 = vpop.permute.xlu0 %526
    %v529 = vadd.f32 %v519, %v527
    %530 = vset.pattern.permute.xlu0 8
    %531 = vperm.xlu0 %530, %v451
    %v532 = vpop.permute.xlu0 %531
    %v534 = vmul.f32 %v532, %v307
    %v535 = vadd.f32 %v529, %v534
    %536 = vset.pattern.permute.xlu0 9
    %537 = vperm.xlu0 %536, %v451
    %v538 = vpop.permute.xlu0 %537
    %v540 = vmul.f32 %v538, %v307
    %542 = vrot.lane.b32.xlu0 %v540, 112
    %v543 = vpop.permute.xlu0 %542
    %v545 = vadd.f32 %v535, %v543
    %546 = vset.pattern.permute.xlu0 10
    %547 = vperm.xlu0 %546, %v451
    %v548 = vpop.permute.xlu0 %547
    %v550 = vmul.f32 %v548, %v307
    %552 = vrot.lane.b32.xlu0 %v550, 96
    %v553 = vpop.permute.xlu0 %552
    %v555 = vadd.f32 %v545, %v553
    %556 = vset.pattern.permute.xlu0 11
    %557 = vperm.xlu0 %556, %v451
    %v558 = vpop.permute.xlu0 %557
    %v560 = vmul.f32 %v558, %v307
    %562 = vrot.lane.b32.xlu0 %v560, 80
    %v563 = vpop.permute.xlu0 %562
    %v565 = vadd.f32 %v555, %v563
    %566 = vset.pattern.permute.xlu0 12
    %567 = vperm.xlu0 %566, %v451
    %v568 = vpop.permute.xlu0 %567
    %v570 = vmul.f32 %v568, %v307
    %572 = vrot.lane.b32.xlu0 %v570, 64
    %v573 = vpop.permute.xlu0 %572
    %v575 = vadd.f32 %v565, %v573
    %576 = vset.pattern.permute.xlu0 13
    %577 = vperm.xlu0 %576, %v451
    %v578 = vpop.permute.xlu0 %577
    %v580 = vmul.f32 %v578, %v307
    %582 = vrot.lane.b32.xlu0 %v580, 48
    %v583 = vpop.permute.xlu0 %582
    %v585 = vadd.f32 %v575, %v583
    %586 = vset.pattern.permute.xlu0 14
    %587 = vperm.xlu0 %586, %v451
    %v588 = vpop.permute.xlu0 %587
    %v590 = vmul.f32 %v588, %v307
    %592 = vrot.lane.b32.xlu0 %v590, 32
    %v593 = vpop.permute.xlu0 %592
    %v595 = vadd.f32 %v585, %v593
    %596 = vset.pattern.permute.xlu0 15
    %597 = vperm.xlu0 %596, %v451
    %v598 = vpop.permute.xlu0 %597
    %v600 = vmul.f32 %v598, %v307
    %602 = vrot.lane.b32.xlu0 %v600, 16
    %v603 = vpop.permute.xlu0 %602
    %v605 = vadd.f32 %v595, %v603
    %606 = vset.pattern.permute.xlu0 16
    %607 = vperm.xlu0 %606, %v451
    %v608 = vpop.permute.xlu0 %607
    %v610 = vmul.f32 %v608, %v446
    %v611 = vadd.f32 %v605, %v610
    %612 = vst.msk [vmem:[#allocation8] sm:$0xff] %vm163, %v611
    // Predicated region
    $region30: #{tpu_custom_call.1} parent=1 // pred_check
      _
    $region31: #{tpu_custom_call.1} parent=1 // pred_check_branch
      %614 = sbr.rel (0) target = $region33
    $region32: #{tpu_custom_call.1} parent=1 // pred_region
      %s616 = ssub.s32 128, 128
      %617 = vsyncadd [#allocation4], %s616
      %s619 = sshll.u32 [#allocation8], 4
      %s620 = int_to_ptr.vmem [resolvable:$true] %s619
      %622 = dma.vmem_to_hbm [thread:$0]  %s620, 128, %s3, [#allocation4]
    $region33: #{tpu_custom_call.1} parent=1 // pred_fallthru
      _
    // Predicated region
    $region34: #{tpu_custom_call.1} parent=1 // pred_check
      _
    $region35: #{tpu_custom_call.1} parent=1 // pred_check_branch
      %624 = sbr.rel (0) target = $region37
    $region36: #{tpu_custom_call.1} parent=1 // pred_region
      %625 = dma.done [#allocation4], 128
    $region37: #{tpu_custom_call.1} parent=1 // pred_fallthru
      _
    %626 = vsyncpa [#allocation3], 1
    %627 = vsyncpa [#allocation6], 1
    %628 = vsyncpa [#allocation4], 1

</llo_original>
